<compile_context>
chip_gen: v7x
topology: tpu7x:2x2x1
jax: 0.10.0
libtpu: 0.0.40
codegen_flags: <defaults>
</compile_context>

<pallas_src>
import functools

import jax
import jax.numpy as jnp
from jax import lax
from jax.experimental import pallas as pl
from jax.experimental.pallas import tpu as pltpu

_EPS = 1e-5
_MIB = 1024 * 1024


# --------------------------------------------------------------------------- #
# VMEM budgeting / tiling selection
# --------------------------------------------------------------------------- #
def _vmem_limit_bytes():
    """Per-call VMEM limit derived from the running chip.

    128-MiB chips (v5e/v6e): 96 MiB so big feature maps can take multi-MiB /
    full-C blocks.  64-MiB chips (v7x, per-TensorCore): 32 MiB.
    """
    try:
        cap = pltpu.get_tpu_info().vmem_capacity_bytes
    except Exception:
        cap = 64 * _MIB  # assume the smallest (v7x per-TC) if the query fails
    if cap <= 64 * _MIB:
        return cap // 2
    return min((cap * 3) // 4, 96 * _MIB)


def _sublane(itemsize):
    return max(8, 32 // max(1, itemsize))  # 8 (f32), 16 (bf16), 32 (int8)


def _round_up(a, b):
    return ((a + b - 1) // b) * b


def _block_footprint_bytes(bc, tw, x_item, m_item, mask_bc):
    """Estimated in-flight VMEM per grid step: double-buffered x / out / mask
    blocks plus the ~3 block-sized f32 temporaries around the mean/var math."""
    x_blk = bc * tw * x_item
    out_blk = bc * tw * x_item
    m_blk = mask_bc * tw * m_item if m_item else 0
    tmp_f32 = 3 * bc * tw * 4
    return 2 * (x_blk + out_blk + m_blk) + tmp_f32


def _channel_block_candidates(c, sub):
    cands = [bc for bc in range(sub, c + 1, sub) if c % bc == 0]
    if c not in cands:
        cands.append(c)  # full channel extent is always a legal block
    return sorted(set(cands), reverse=True)


def _choose_tiling(n, c, hw_pad, x_item, m_item, mask_per_channel, budget):
    """Return (bc, thw, two_pass)."""
    sub = _sublane(x_item)
    cands = _channel_block_candidates(c, sub)

    def fits(bc, tw):
        mask_bc = bc if mask_per_channel else 1
        return _block_footprint_bytes(bc, tw, x_item, m_item, mask_bc) <= budget

    # Single pass over the full (lane-padded) spatial extent.
    for bc in cands:
        if fits(bc, hw_pad):
            # v7x: guarantee >= 4 grid steps so both TensorCores get work.
            while n * (c // bc) < 4:
                half = bc // 2
                if half >= sub and half % sub == 0 and c % half == 0:
                    bc = half
                else:
                    break
            return bc, hw_pad, False

    # Two-pass (hw-tiled) variant: smallest legal channel block, largest
    # lane-aligned spatial tile that fits the budget.
    bc = cands[-1]
    thw = None
    tw = hw_pad
    while tw >= 128:
        if hw_pad % tw == 0 and fits(bc, tw):
            thw = tw
            break
        tw -= 128
    if thw is None:
        thw = 128  # floor (only reachable with an artificially tiny budget)
    return bc, thw, True


# --------------------------------------------------------------------------- #
# Kernels
# --------------------------------------------------------------------------- #
def _single_pass_kernel(*refs, hw_valid, hw_pad, has_mask):
    """Instance stats + folded affine (+ optional blend) over the full HW."""
    if has_mask:
        x_ref, g_ref, b_ref, m_ref, o_ref = refs
    else:
        x_ref, g_ref, b_ref, o_ref = refs

    x = x_ref[...].astype(jnp.float32)                      # (1, bc, hw_pad)
    inv_n = jnp.float32(1.0 / hw_valid)
    if hw_valid != hw_pad:
        # Wrapper padded HW up to a lane multiple; ignore pad lanes in stats.
        lane = lax.broadcasted_iota(jnp.int32, x.shape, 2)
        valid = lane < hw_valid
        xs = jnp.where(valid, x, 0.0)
        mean = jnp.sum(xs, axis=-1, keepdims=True) * inv_n
        diff = jnp.where(valid, x - mean, 0.0)
    else:
        mean = jnp.sum(x, axis=-1, keepdims=True) * inv_n
        diff = x - mean
    var = jnp.sum(diff * diff, axis=-1, keepdims=True) * inv_n   # biased var
    inv = lax.rsqrt(var + _EPS)

    scale = g_ref[...] * inv                                # (1, bc, 1), f32
    shift = b_ref[...] - scale * mean                       # fold mean/gamma
    out = scale * x + shift
    if has_mask:
        m = m_ref[...].astype(jnp.float32)                  # (1, 1|bc, hw_pad)
        out = x + m * (out - x)
    o_ref[...] = out.astype(o_ref.dtype)                    # single fused store


def _stats_kernel(x_ref, mean_ref, rstd_ref, s_acc, ss_acc, *, hw_valid, hw_pad, thw):
    """Pass 1 of the hw-tiled variant: accumulate sum / sum-of-squares."""
    t = pl.program_id(2)

    @pl.when(t == 0)
    def _():
        s_acc[...] = jnp.zeros_like(s_acc)
        ss_acc[...] = jnp.zeros_like(ss_acc)

    x = x_ref[...].astype(jnp.float32)                      # (1, bc, thw)
    if hw_valid != hw_pad:
        lane = lax.broadcasted_iota(jnp.int32, x.shape, 2)
        x = jnp.where(lane < (hw_valid - t * thw), x, 0.0)
    s_acc[...] += jnp.sum(x, axis=-1, keepdims=True)
    ss_acc[...] += jnp.sum(x * x, axis=-1, keepdims=True)

    @pl.when(t == pl.num_programs(2) - 1)
    def _():
        inv_n = jnp.float32(1.0 / hw_valid)
        mean = s_acc[...] * inv_n
        var = jnp.maximum(ss_acc[...] * inv_n - mean * mean, 0.0)
        mean_ref[...] = mean
        rstd_ref[...] = lax.rsqrt(var + _EPS)


def _apply_kernel(*refs, has_mask):
    """Pass 2 of the hw-tiled variant: folded affine (+ optional blend)."""
    if has_mask:
        x_ref, g_ref, b_ref, mean_ref, rstd_ref, m_ref, o_ref = refs
    else:
        x_ref, g_ref, b_ref, mean_ref, rstd_ref, o_ref = refs
    x = x_ref[...].astype(jnp.float32)
    scale = g_ref[...] * rstd_ref[...]
    shift = b_ref[...] - scale * mean_ref[...]
    out = scale * x + shift
    if has_mask:
        m = m_ref[...].astype(jnp.float32)
        out = x + m * (out - x)
    o_ref[...] = out.astype(o_ref.dtype)


def _masked_avg_pool_kernel(x_ref, m_ref, o_ref):
    """MaskedAvgPool:  sum_hw(x) / (sum(mask) + 1)  per (n, c)."""
    x = x_ref[...].astype(jnp.float32)                      # (1, C, HW)
    m = m_ref[...].astype(jnp.float32)                      # (1, 1, HWm)
    s = jnp.sum(x, axis=-1, keepdims=True)                  # (1, C, 1)
    area = jnp.sum(m, axis=-1, keepdims=True) + 1.0         # (1, 1, 1)
    o_ref[...] = (s / area).astype(o_ref.dtype)


# --------------------------------------------------------------------------- #
# pallas_call wrappers
# --------------------------------------------------------------------------- #
@functools.partial(jax.jit,
                   static_argnames=("bc", "hw_valid", "deep_buffer", "vmem_limit"))
def _adain_single_pass(x3, g3, b3, m3, *, bc, hw_valid, deep_buffer, vmem_limit):
    n, c, hw_pad = x3.shape
    has_mask = m3 is not None

    pipe = dict(pipeline_mode=pl.Buffered(3)) if deep_buffer else {}
    x_in_spec = pl.BlockSpec((1, bc, hw_pad), lambda ni, j: (ni, j, 0), **pipe)
    out_spec = pl.BlockSpec((1, bc, hw_pad), lambda ni, j: (ni, j, 0))
    vec_spec = pl.BlockSpec((1, bc, 1), lambda ni, j: (ni, j, 0))

    in_specs = [x_in_spec, vec_spec, vec_spec]
    args = [x3, g3, b3]
    if has_mask:
        if m3.shape[1] == 1:   # un-broadcast mask: one row per batch, reused
            m_spec = pl.BlockSpec((1, 1, hw_pad), lambda ni, j: (ni, 0, 0), **pipe)
        else:                  # per-channel mask (stored bf16 in HBM)
            m_spec = pl.BlockSpec((1, bc, hw_pad), lambda ni, j: (ni, j, 0), **pipe)
        in_specs.append(m_spec)
        args.append(m3)

    kernel = functools.partial(_single_pass_kernel, hw_valid=hw_valid,
                               hw_pad=hw_pad, has_mask=has_mask)
    return pl.pallas_call(
        kernel,
        out_shape=jax.ShapeDtypeStruct((n, c, hw_pad), x3.dtype),
        grid_spec=pltpu.PrefetchScalarGridSpec(
            num_scalar_prefetch=0,
            grid=(n, c // bc),
            in_specs=in_specs,
            out_specs=out_spec,
        ),
        compiler_params=pltpu.CompilerParams(
            dimension_semantics=("parallel", "parallel"),
            vmem_limit_bytes=int(vmem_limit),
        ),
    )(*args)


@functools.partial(jax.jit,
                   static_argnames=("bc", "thw", "hw_valid", "deep_buffer", "vmem_limit"))
def _adain_two_pass(x3, g3, b3, m3, *, bc, thw, hw_valid, deep_buffer, vmem_limit):
    n, c, hw_pad = x3.shape
    n_t = hw_pad // thw
    has_mask = m3 is not None

    # Pass 1: per-(n, c) mean / rstd with an hw-tiled accumulator.
    stats_kernel = functools.partial(_stats_kernel, hw_valid=hw_valid,
                                     hw_pad=hw_pad, thw=thw)
    mean, rstd = pl.pallas_call(
        stats_kernel,
        out_shape=(jax.ShapeDtypeStruct((n, c, 1), jnp.float32),
                   jax.ShapeDtypeStruct((n, c, 1), jnp.float32)),
        grid_spec=pltpu.PrefetchScalarGridSpec(
            num_scalar_prefetch=0,
            grid=(n, c // bc, n_t),
            in_specs=[pl.BlockSpec((1, bc, thw), lambda ni, j, t: (ni, j, t))],
            out_specs=(pl.BlockSpec((1, bc, 1), lambda ni, j, t: (ni, j, 0)),
                       pl.BlockSpec((1, bc, 1), lambda ni, j, t: (ni, j, 0))),
            scratch_shapes=[pltpu.VMEM((1, bc, 1), jnp.float32),
                            pltpu.VMEM((1, bc, 1), jnp.float32)],
        ),
        compiler_params=pltpu.CompilerParams(
            dimension_semantics=("parallel", "parallel", "arbitrary"),
            vmem_limit_bytes=int(vmem_limit),
        ),
    )(x3)

    # Pass 2: fully parallel folded affine (+ optional blend).
    pipe = dict(pipeline_mode=pl.Buffered(3)) if deep_buffer else {}
    x_spec = pl.BlockSpec((1, bc, thw), lambda ni, j, t: (ni, j, t), **pipe)
    out_spec = pl.BlockSpec((1, bc, thw), lambda ni, j, t: (ni, j, t))
    vec_spec = pl.BlockSpec((1, bc, 1), lambda ni, j, t: (ni, j, 0))
    in_specs = [x_spec, vec_spec, vec_spec, vec_spec, vec_spec]
    args = [x3, g3, b3, mean, rstd]
    if has_mask:
        if m3.shape[1] == 1:
            m_spec = pl.BlockSpec((1, 1, thw), lambda ni, j, t: (ni, 0, t), **pipe)
        else:
            m_spec = pl.BlockSpec((1, bc, thw), lambda ni, j, t: (ni, j, t), **pipe)
        in_specs.append(m_spec)
        args.append(m3)

    apply_kernel = functools.partial(_apply_kernel, has_mask=has_mask)
    return pl.pallas_call(
        apply_kernel,
        out_shape=jax.ShapeDtypeStruct((n, c, hw_pad), x3.dtype),
        grid_spec=pltpu.PrefetchScalarGridSpec(
            num_scalar_prefetch=0,
            grid=(n, c // bc, n_t),
            in_specs=in_specs,
            out_specs=out_spec,
        ),
        compiler_params=pltpu.CompilerParams(
            dimension_semantics=("parallel", "parallel", "parallel"),
            vmem_limit_bytes=int(vmem_limit),
        ),
    )(*args)


def adaptive_instance_norm(x, gamma, beta, mask=None, *, max_block_bytes=None):
    """x: (N, C, H, W); gamma/beta broadcastable to (N, C, 1, 1);
    mask: None, or broadcastable to (N, 1, H, W) / (N, C, H, W)."""
    n, c, h, w = x.shape
    hw = h * w
    hw_pad = _round_up(hw, 128)  # lane-dense stores (unmasked vst)
    x_item = jnp.dtype(x.dtype).itemsize

    if mask is not None:
        m = jnp.asarray(mask)
        m = jnp.broadcast_to(m, jnp.broadcast_shapes(m.shape, (n, 1, h, w)))
        mc = m.shape[1]
        per_channel = mc != 1
        # Per-channel masks are a full extra HBM pass -> store bf16 in HBM.
        m_dtype = jnp.bfloat16 if per_channel else x.dtype
        m3 = m.astype(m_dtype).reshape(n, mc, hw)
        if hw_pad != hw:
            m3 = jnp.pad(m3, ((0, 0), (0, 0), (0, hw_pad - hw)))
        m_item = jnp.dtype(m_dtype).itemsize
    else:
        m3, per_channel, m_item = None, False, 0

    vmem_limit = _vmem_limit_bytes()
    budget = (vmem_limit * 7) // 8
    if max_block_bytes is not None:
        budget = min(int(max_block_bytes), budget)
    bc, thw, two_pass = _choose_tiling(n, c, hw_pad, x_item, m_item,
                                       per_channel, budget)

    x3 = x.reshape(n, c, hw)
    if hw_pad != hw:
        x3 = jnp.pad(x3, ((0, 0), (0, 0), (0, hw_pad - hw)))

    g3 = jnp.broadcast_to(gamma, (n, c, 1, 1)).reshape(n, c, 1).astype(jnp.float32)
    b3 = jnp.broadcast_to(beta, (n, c, 1, 1)).reshape(n, c, 1).astype(jnp.float32)

    # Deepen pipelining only for fine-grained grids (many small blocks),
    # where DMA issue latency rather than bandwidth is exposed (v7x).
    n_steps = n * (c // bc) * (hw_pad // thw)
    deep_buffer = (bc * thw * x_item <= 512 * 1024) and (n_steps >= 16)

    if two_pass:
        out3 = _adain_two_pass(x3, g3, b3, m3, bc=bc, thw=thw, hw_valid=hw,
                               deep_buffer=deep_buffer, vmem_limit=vmem_limit)
    else:
        out3 = _adain_single_pass(x3, g3, b3, m3, bc=bc, hw_valid=hw,
                                  deep_buffer=deep_buffer, vmem_limit=vmem_limit)

    if hw_pad != hw:
        out3 = out3[:, :, :hw]
    return out3.reshape(n, c, h, w)


def masked_avg_pool(x, mask):
    """ADGANOriginalEncoder.maskpool:  sum_hw(x) / (sum(mask) + 1)."""
    n, c, h, w = x.shape
    # TODO(synk): F.interpolate(mode='nearest') index rounding can differ from
    # jax.image.resize for non-integer scale factors.
    m = jax.image.resize(jnp.asarray(mask, jnp.float32),
                         (n, mask.shape[1], h, w), method="nearest")
    x3 = x.reshape(n, c, h * w)
    m3 = m.reshape(n, 1, -1)
    out = pl.pallas_call(
        _masked_avg_pool_kernel,
        out_shape=jax.ShapeDtypeStruct((n, c, 1), x.dtype),
        grid_spec=pltpu.PrefetchScalarGridSpec(
            num_scalar_prefetch=0,
            grid=(n,),
            in_specs=[pl.BlockSpec((1, c, h * w), lambda ni: (ni, 0, 0)),
                      pl.BlockSpec((1, 1, m3.shape[2]), lambda ni: (ni, 0, 0))],
            out_specs=pl.BlockSpec((1, c, 1), lambda ni: (ni, 0, 0)),
        ),
        compiler_params=pltpu.CompilerParams(
            dimension_semantics=("parallel",),
            vmem_limit_bytes=int(_vmem_limit_bytes()),
        ),
    )(x3, m3)
    return out.reshape(n, c, 1, 1)


# --------------------------------------------------------------------------- #
# References + self-test
# --------------------------------------------------------------------------- #
def _adain_reference(x, gamma, beta, mask=None):
    xf = x.astype(jnp.float32)
    mean = jnp.mean(xf, axis=(2, 3), keepdims=True)
    var = jnp.mean((xf - mean) ** 2, axis=(2, 3), keepdims=True)
    out = (xf - mean) * lax.rsqrt(var + _EPS)
    out = gamma * out + beta
    if mask is not None:
        mf = jnp.asarray(mask, jnp.float32)
        out = out * mf + xf * (1.0 - mf)
    return out.astype(x.dtype)


def _maskpool_reference(x, mask):
    n, c, h, w = x.shape
    m = jax.image.resize(jnp.asarray(mask, jnp.float32),
                         (n, mask.shape[1], h, w), method="nearest")
    s = x.reshape(n, c, -1).astype(jnp.float32).sum(-1)
    area = m.reshape(n, 1, -1).sum(-1) + 1.0
    return (s / area)[:, :, None, None].astype(x.dtype)


if __name__ == "__main__":
    key = jax.random.PRNGKey(0)
    kx, kg, kb, km = jax.random.split(key, 4)

    # 1) Small DiOr/ADGAN style-injection shapes: unmasked + (N,1,H,W) mask.
    N, C, H, W = 2, 4, 16, 16
    x = jax.random.normal(kx, (N, C, H, W), dtype=jnp.float32)
    gamma = jax.random.normal(kg, (N, C, 1, 1), dtype=jnp.float32)
    beta = jax.random.normal(kb, (N, C, 1, 1), dtype=jnp.float32)
    mask = (jax.random.uniform(km, (N, 1, H, W)) > 0.5).astype(jnp.float32)

    out = adaptive_instance_norm(x, gamma, beta)
    jax.block_until_ready(out)
    assert jnp.allclose(out, _adain_reference(x, gamma, beta), atol=1e-4, rtol=1e-4), \
        "unmasked mismatch"

    out_m = adaptive_instance_norm(x, gamma, beta, mask)
    jax.block_until_ready(out_m)
    assert jnp.allclose(out_m, _adain_reference(x, gamma, beta, mask), atol=1e-4, rtol=1e-4), \
        "masked mismatch"

    # 2) Multi channel-block path with a per-channel (bf16-in-HBM) mask.
    C2, H2, W2 = 16, 16, 16
    x2 = jax.random.normal(kx, (N, C2, H2, W2), dtype=jnp.float32)
    g2 = jax.random.normal(kg, (N, C2, 1, 1), dtype=jnp.float32)
    b2 = jax.random.normal(kb, (N, C2, 1, 1), dtype=jnp.float32)
    m2 = (jax.random.uniform(km, (N, C2, H2, W2)) > 0.5).astype(jnp.float32)
    out2 = adaptive_instance_norm(x2, g2, b2, m2, max_block_bytes=80_000)
    jax.block_until_ready(out2)
    assert jnp.allclose(out2, _adain_reference(x2, g2, b2, m2), atol=1e-4, rtol=1e-4), \
        "multi-block / per-channel-mask mismatch"

    # 3) Lane-padding path: H*W not a multiple of 128.
    C3, H3, W3 = 8, 10, 10
    x3 = jax.random.normal(kx, (N, C3, H3, W3), dtype=jnp.float32)
    g3 = jax.random.normal(kg, (N, C3, 1, 1), dtype=jnp.float32)
    b3 = jax.random.normal(kb, (N, C3, 1, 1), dtype=jnp.float32)
    m3 = (jax.random.uniform(km, (N, 1, H3, W3)) > 0.5).astype(jnp.float32)
    out3 = adaptive_instance_norm(x3, g3, b3, m3)
    jax.block_until_ready(out3)
    assert jnp.allclose(out3, _adain_reference(x3, g3, b3, m3), atol=1e-4, rtol=1e-4), \
        "lane-padded mismatch"

    # 4) hw-tiled two-pass path (forced with a tiny block budget).
    out4 = adaptive_instance_norm(x2, g2, b2, mask, max_block_bytes=32_768)
    jax.block_until_ready(out4)
    assert jnp.allclose(out4, _adain_reference(x2, g2, b2, mask), atol=1e-4, rtol=1e-4), \
        "two-pass (hw-tiled) mismatch"

    # 5) MaskedAvgPool from the encoder's masked-pooling branch.
    xp = jax.random.normal(kx, (N, 8, H, W), dtype=jnp.float32)
    mp = (jax.random.uniform(km, (N, 1, H, W)) > 0.5).astype(jnp.float32)
    pooled = masked_avg_pool(xp, mp)
    jax.block_until_ready(pooled)
    assert jnp.allclose(pooled, _maskpool_reference(xp, mp), atol=1e-4, rtol=1e-4), \
        "masked-avg-pool mismatch"

    print("KERNEL_OK")
</pallas_src>

<mosaic_0001>
module attributes {stable_mosaic.version = 11 : i64} {
  func.func @_single_pass_kernel(%arg0: i32, %arg1: i32, %arg2: memref<1x4x256xf32, #tpu.memory_space<vmem>>, %arg3: memref<1x4x1xf32, #tpu.memory_space<vmem>>, %arg4: memref<1x4x1xf32, #tpu.memory_space<vmem>>, %arg5: memref<1x4x256xf32, #tpu.memory_space<vmem>>) attributes {dimension_semantics = [#tpu.dimension_semantics<parallel>, #tpu.dimension_semantics<parallel>], iteration_bounds = array<i64: 2, 1>, scalar_prefetch = 0 : i64, scratch_operands = 0 : i64, tpu.core_type = #tpu.core_type<tc>, window_params = [{transform_indices = @transform_0, window_bounds = array<i64: 1, 4, 256>}, {transform_indices = @transform_1, window_bounds = array<i64: 1, 4, 1>}, {transform_indices = @transform_2, window_bounds = array<i64: 1, 4, 1>}, {transform_indices = @transform_3, window_bounds = array<i64: 1, 4, 256>}]} {
    %c0 = arith.constant 0 : index
    %c0_0 = arith.constant 0 : index
    %c0_1 = arith.constant 0 : index
    %0 = vector.load %arg2[%c0, %c0_0, %c0_1] : memref<1x4x256xf32, #tpu.memory_space<vmem>>, vector<1x4x256xf32>
    %cst = arith.constant dense<0.000000e+00> : vector<1x4xf32>
    %1 = vector.multi_reduction <add>, %0, %cst [2] : vector<1x4x256xf32> to vector<1x4xf32>
    %2 = vector.shape_cast %1 : vector<1x4xf32> to vector<1x4x1xf32>
    %cst_2 = arith.constant 3.906250e-03 : f32
    %3 = vector.broadcast %cst_2 : f32 to vector<1x4x1xf32>
    %4 = arith.mulf %2, %3 : vector<1x4x1xf32>
    %5 = vector.broadcast %4 : vector<1x4x1xf32> to vector<1x4x256xf32>
    %6 = arith.subf %0, %5 : vector<1x4x256xf32>
    %7 = arith.mulf %6, %6 : vector<1x4x256xf32>
    %cst_3 = arith.constant dense<0.000000e+00> : vector<1x4xf32>
    %8 = vector.multi_reduction <add>, %7, %cst_3 [2] : vector<1x4x256xf32> to vector<1x4xf32>
    %9 = vector.shape_cast %8 : vector<1x4xf32> to vector<1x4x1xf32>
    %cst_4 = arith.constant 3.906250e-03 : f32
    %10 = vector.broadcast %cst_4 : f32 to vector<1x4x1xf32>
    %11 = arith.mulf %9, %10 : vector<1x4x1xf32>
    %cst_5 = arith.constant 9.99999974E-6 : f32
    %12 = vector.broadcast %cst_5 : f32 to vector<1x4x1xf32>
    %13 = arith.addf %11, %12 : vector<1x4x1xf32>
    %14 = math.rsqrt %13 : vector<1x4x1xf32>
    %c0_6 = arith.constant 0 : index
    %c0_7 = arith.constant 0 : index
    %c0_8 = arith.constant 0 : index
    %15 = vector.load %arg3[%c0_6, %c0_7, %c0_8] : memref<1x4x1xf32, #tpu.memory_space<vmem>>, vector<1x4x1xf32>
    %16 = arith.mulf %15, %14 : vector<1x4x1xf32>
    %c0_9 = arith.constant 0 : index
    %c0_10 = arith.constant 0 : index
    %c0_11 = arith.constant 0 : index
    %17 = vector.load %arg4[%c0_9, %c0_10, %c0_11] : memref<1x4x1xf32, #tpu.memory_space<vmem>>, vector<1x4x1xf32>
    %18 = arith.mulf %16, %4 : vector<1x4x1xf32>
    %19 = arith.subf %17, %18 : vector<1x4x1xf32>
    %20 = vector.broadcast %16 : vector<1x4x1xf32> to vector<1x4x256xf32>
    %21 = arith.mulf %20, %0 : vector<1x4x256xf32>
    %22 = vector.broadcast %19 : vector<1x4x1xf32> to vector<1x4x256xf32>
    %23 = arith.addf %21, %22 : vector<1x4x256xf32>
    %c0_12 = arith.constant 0 : index
    %c0_13 = arith.constant 0 : index
    %c0_14 = arith.constant 0 : index
    %24 = vector.load %arg5[%c0_12, %c0_13, %c0_14] : memref<1x4x256xf32, #tpu.memory_space<vmem>>, vector<1x4x256xf32>
    tpu.vector_store %arg5[%c0_12, %c0_13, %c0_14], %23 {strides = array<i32>} : memref<1x4x256xf32, #tpu.memory_space<vmem>>, vector<1x4x256xf32>,
    return
  }
  func.func @transform_0(%arg0: i32, %arg1: i32) -> (i32, i32, i32) {
    %c0_i32 = arith.constant 0 : i32
    %c0_i32_0 = arith.constant 0 : i32
    return %arg0, %arg1, %c0_i32 : i32, i32, i32
  }
  func.func @transform_1(%arg0: i32, %arg1: i32) -> (i32, i32, i32) {
    %c0_i32 = arith.constant 0 : i32
    %c0_i32_0 = arith.constant 0 : i32
    return %arg0, %arg1, %c0_i32 : i32, i32, i32
  }
  func.func @transform_2(%arg0: i32, %arg1: i32) -> (i32, i32, i32) {
    %c0_i32 = arith.constant 0 : i32
    %c0_i32_0 = arith.constant 0 : i32
    return %arg0, %arg1, %c0_i32 : i32, i32, i32
  }
  func.func @transform_3(%arg0: i32, %arg1: i32) -> (i32, i32, i32) {
    %c0_i32 = arith.constant 0 : i32
    %c0_i32_0 = arith.constant 0 : i32
    return %arg0, %arg1, %c0_i32 : i32, i32, i32
  }
}

</mosaic_0001>

<llo_original>
// kernel: _adain_single_pass.1
$region0: #{_adain_single_pass.1}
  #allocation0 [shape = 'u32[]', space=smem, size = 0x4, offset = 0x4, fixed_abs, tag = 'smem constant byte address 0x4 - core index']
  #allocation1 [shape = 'u32[144,128]{1,0:T(1,128)}', space=vmem, size = 0x12000, scoped, tag = 'internal scratch']
  %s0 = inlined_call_operand.vmem [shape: f32[2,4,256], index: 0, kind: input, shape index: {}]
  %s1 = inlined_call_operand.vmem [shape: f32[2,4,1], index: 1, kind: input, shape index: {}]
  %s2 = inlined_call_operand.vmem [shape: f32[2,4,1], index: 2, kind: input, shape index: {}]
  %s3 = inlined_call_operand.hbm [shape: f32[2,4,256], index: 3, kind: output, shape index: {}]
  %s4 = sld [smem:[#allocation0]]
  $region45: #{_adain_single_pass.1} parent=0
    _
  %s6 = ssub.s32 1, %s4
  %s7 = scalar_select 0, %s6, %s4
  $region1: #{_adain_single_pass.1} parent=0
    #allocation2 [shape = 'u8[8192]{0}', space=vmem, size = 0x2000, scoped, tag = 'output window, operand 0']
    #allocation3 [shape = 's32[2]{0}', space=sflag, size = 0x8, scoped, tag = 'scoped memory for _adain_single_pass.1']
    %8 = vsyncpa [#allocation3], 0
    %s9 = scalar_lea.sflag [#allocation3], 1
    %10 = vsyncpa %s9, 0
    loop: start=0, step=1, limit=4
    $region2: #{_adain_single_pass.1} parent=1 // loop_pre_header
      _
    $region3: #{_adain_single_pass.1} parent=1 // loop_header
      %s12 = sphi 0, %s16
      %p13 = scmp.ge.s32.totalorder %s12, 4
      %s19 = sphi 0, %s31
      %s20 = sphi 0, %s27
      %s21 = sphi 0, %s19
      %s22 = sphi 0, %s20
      %s23 = sphi 0, %s21
      %s24 = sphi 0, %s22
      %s36 = sphi 0, %s38
      %s39 = sphi 0, %s36
      %s40 = sphi 0, %s39
      %s56 = sphi 0, %s40
      %s64 = sphi 0, %s66
      %s67 = sphi 0, %s64
      %s68 = sphi 0, %s67
      %s84 = sphi 0, %s68
      %s92 = sphi 0, %s94
      %s95 = sphi 0, %s92
      %s96 = sphi 0, %s95
      %s112 = sphi 0, %s96
      %s120 = sphi 0, %s122
      %s123 = sphi 0, %s120
      %s124 = sphi 0, %s123
      %s140 = sphi 0, %s124
    $region4: #{_adain_single_pass.1} parent=1 // loop_header_branch
      %15 = sbr.rel (%p13) target = $region8
    $region5: #{_adain_single_pass.1} parent=1 // loop_body
      %s17 = ssub.s32 %s12, 1
      %s18 = ssub.s32 %s12, 2
      %s25 = sadd.s32 1, %s20
      %p26 = scmp.ge.s32.totalorder %s25, 1
      %s27 = scalar_select %p26, 0, %s25
      %s28 = sadd.s32 1, %s19
      %s29 = scalar_select %p26, %s28, %s19
      %p30 = scmp.ge.s32.totalorder %s29, 2
      %s31 = scalar_select %p30, 0, %s29
      %s32 = ssub.s32 %s19, %s31
      %s33 = ssub.s32 %s20, %s27
      %s34 = sor.u32 %s32, %s33
      %p35 = scmp.eq.s32.totalorder %s34, 0
      %s37 = sadd.s32 %s36, 1
      %s38 = scalar_select %p35, %s36, %s37
      %p41 = pneg %p35
      %p42 = scmp.eq.s32.totalorder %s12, 1
      %p43 = por %p41, %p42
      %p44 = scmp.ne.s32.totalorder %s36, %s39
      %p45 = scmp.eq.s32.totalorder %s12, 0
      %p46 = por %p44, %p45
      %p47 = scmp.ne.s32.totalorder %s36, %s39
      %p48 = scmp.eq.s32.totalorder %s17, 1
      %p49 = por %p47, %p48
      %p50 = scmp.ne.s32.totalorder %s39, %s40
      %p51 = scmp.eq.s32.totalorder %s17, 0
      %p52 = por %p50, %p51
      %p53 = scmp.ne.s32.totalorder %s39, %s40
      %p54 = scmp.eq.s32.totalorder %s18, 1
      %p55 = por %p53, %p54
      %p57 = scmp.ne.s32.totalorder %s40, %s56
      %p58 = scmp.eq.s32.totalorder %s18, 0
      %p59 = por %p57, %p58
      %s60 = ssub.s32 %s19, %s31
      %s61 = ssub.s32 %s20, %s27
      %s62 = sor.u32 %s60, %s61
      %p63 = scmp.eq.s32.totalorder %s62, 0
      %s65 = sadd.s32 %s64, 1
      %s66 = scalar_select %p63, %s64, %s65
      %p69 = pneg %p63
      %p70 = scmp.eq.s32.totalorder %s12, 1
      %p71 = por %p69, %p70
      %p72 = scmp.ne.s32.totalorder %s64, %s67
      %p73 = scmp.eq.s32.totalorder %s12, 0
      %p74 = por %p72, %p73
      %p75 = scmp.ne.s32.totalorder %s64, %s67
      %p76 = scmp.eq.s32.totalorder %s17, 1
      %p77 = por %p75, %p76
      %p78 = scmp.ne.s32.totalorder %s67, %s68
      %p79 = scmp.eq.s32.totalorder %s17, 0
      %p80 = por %p78, %p79
      %p81 = scmp.ne.s32.totalorder %s67, %s68
      %p82 = scmp.eq.s32.totalorder %s18, 1
      %p83 = por %p81, %p82
      %p85 = scmp.ne.s32.totalorder %s68, %s84
      %p86 = scmp.eq.s32.totalorder %s18, 0
      %p87 = por %p85, %p86
      %s88 = ssub.s32 %s19, %s31
      %s89 = ssub.s32 %s20, %s27
      %s90 = sor.u32 %s88, %s89
      %p91 = scmp.eq.s32.totalorder %s90, 0
      %s93 = sadd.s32 %s92, 1
      %s94 = scalar_select %p91, %s92, %s93
      %p97 = pneg %p91
      %p98 = scmp.eq.s32.totalorder %s12, 1
      %p99 = por %p97, %p98
      %p100 = scmp.ne.s32.totalorder %s92, %s95
      %p101 = scmp.eq.s32.totalorder %s12, 0
      %p102 = por %p100, %p101
      %p103 = scmp.ne.s32.totalorder %s92, %s95
      %p104 = scmp.eq.s32.totalorder %s17, 1
      %p105 = por %p103, %p104
      %p106 = scmp.ne.s32.totalorder %s95, %s96
      %p107 = scmp.eq.s32.totalorder %s17, 0
      %p108 = por %p106, %p107
      %p109 = scmp.ne.s32.totalorder %s95, %s96
      %p110 = scmp.eq.s32.totalorder %s18, 1
      %p111 = por %p109, %p110
      %p113 = scmp.ne.s32.totalorder %s96, %s112
      %p114 = scmp.eq.s32.totalorder %s18, 0
      %p115 = por %p113, %p114
      %s116 = ssub.s32 %s19, %s31
      %s117 = ssub.s32 %s20, %s27
      %s118 = sor.u32 %s116, %s117
      %p119 = scmp.eq.s32.totalorder %s118, 0
      %s121 = sadd.s32 %s120, 1
      %s122 = scalar_select %p119, %s120, %s121
      %p125 = pneg %p119
      %p126 = scmp.eq.s32.totalorder %s12, 1
      %p127 = por %p125, %p126
      %p128 = scmp.ne.s32.totalorder %s120, %s123
      %p129 = scmp.eq.s32.totalorder %s12, 0
      %p130 = por %p128, %p129
      %p131 = scmp.ne.s32.totalorder %s120, %s123
      %p132 = scmp.eq.s32.totalorder %s17, 1
      %p133 = por %p131, %p132
      %p134 = scmp.ne.s32.totalorder %s123, %s124
      %p135 = scmp.eq.s32.totalorder %s17, 0
      %p136 = por %p134, %p135
      %p137 = scmp.ne.s32.totalorder %s123, %s124
      %p138 = scmp.eq.s32.totalorder %s18, 1
      %p139 = por %p137, %p138
      %p141 = scmp.ne.s32.totalorder %s124, %s140
      %p142 = scmp.eq.s32.totalorder %s18, 0
      %p143 = por %p141, %p142
      %p144 = scmp.le.s32.totalorder 1, %s12
      %p145 = scmp.lt.s32.totalorder %s12, 3
      %p146 = pnand %p144, %p145
      %p147 = pneg %p146
      // Predicated region
      $region9: #{_adain_single_pass.1} parent=5 // pred_check
        _
      $region10: #{_adain_single_pass.1} parent=5 // pred_check_branch
        %149 = sbr.rel (%p146) target = $region12
      $region11: #{_adain_single_pass.1} parent=5 // pred_region
        %s150 = ssub.s32 %s12, 1
      $region12: #{_adain_single_pass.1} parent=5 // pred_fallthru
        _
      %p151 = scmp.lt.s32.totalorder %s12, 2
      // Predicated region
      $region13: #{_adain_single_pass.1} parent=5 // pred_check
        %p152 = pneg %p151
      $region14: #{_adain_single_pass.1} parent=5 // pred_check_branch
        %154 = sbr.rel (%p152) target = $region16
      $region15: #{_adain_single_pass.1} parent=5 // pred_region
        // Predicated region
        $region17: #{_adain_single_pass.1} parent=15 // pred_check
          %p155 = pneg %p46
        $region18: #{_adain_single_pass.1} parent=15 // pred_check_branch
          %157 = sbr.rel (%p155) target = $region20
        $region19: #{_adain_single_pass.1} parent=15 // pred_region
          %p158 = scmp.lt.s32.totalorder %s19, 1
          %s159 = scalar_select %p158, %s19, 1
          %p160 = scmp.lt.s32.totalorder %s20, 0
          %s161 = scalar_select %p160, %s20, 0
          %s162 = smul.addr %s161, 2
          %s163 = smul.addr %s159, 2
          %s164 = sadd.s32 %s162, %s163
          %s165 = smul.addr %s164, 4
          %s166 = scalar_lea.vmem %s0, %s165
        $region20: #{_adain_single_pass.1} parent=15 // pred_fallthru
          _
        // Predicated region
        $region21: #{_adain_single_pass.1} parent=15 // pred_check
          %p167 = pneg %p74
        $region22: #{_adain_single_pass.1} parent=15 // pred_check_branch
          %169 = sbr.rel (%p167) target = $region24
        $region23: #{_adain_single_pass.1} parent=15 // pred_region
          %p170 = scmp.lt.s32.totalorder %s19, 1
          %s171 = scalar_select %p170, %s19, 1
          %p172 = scmp.lt.s32.totalorder %s20, 0
          %s173 = scalar_select %p172, %s20, 0
          %s174 = sadd.s32 %s173, %s171
          %s175 = smul.addr %s174, 4
          %s176 = scalar_lea.vmem %s1, %s175
        $region24: #{_adain_single_pass.1} parent=15 // pred_fallthru
          _
        // Predicated region
        $region25: #{_adain_single_pass.1} parent=15 // pred_check
          %p177 = pneg %p102
        $region26: #{_adain_single_pass.1} parent=15 // pred_check_branch
          %179 = sbr.rel (%p177) target = $region28
        $region27: #{_adain_single_pass.1} parent=15 // pred_region
          %p180 = scmp.lt.s32.totalorder %s19, 1
          %s181 = scalar_select %p180, %s19, 1
          %p182 = scmp.lt.s32.totalorder %s20, 0
          %s183 = scalar_select %p182, %s20, 0
          %s184 = sadd.s32 %s183, %s181
          %s185 = smul.addr %s184, 4
          %s186 = scalar_lea.vmem %s2, %s185
        $region28: #{_adain_single_pass.1} parent=15 // pred_fallthru
          _
      $region16: #{_adain_single_pass.1} parent=5 // pred_fallthru
        _
      %p187 = scmp.le.s32.totalorder 1, %s12
      %p188 = scmp.lt.s32.totalorder %s12, 3
      %p189 = pnand %p187, %p188
      %p190 = pneg %p189
      // Predicated region
      $region29: #{_adain_single_pass.1} parent=5 // pred_check
        _
      $region30: #{_adain_single_pass.1} parent=5 // pred_check_branch
        %192 = sbr.rel (%p189) target = $region32
      $region31: #{_adain_single_pass.1} parent=5 // pred_region
        %s193 = ssub.s32 %s12, 1
        %p194 = scmp.lt.s32.totalorder %s21, 1
        %s195 = scalar_select %p194, %s21, 1
        %p196 = scmp.lt.s32.totalorder %s22, 0
        %s197 = scalar_select %p196, %s22, 0
        %s198 = smul.addr %s197, 2
        %s199 = smul.addr %s195, 2
        %s200 = sadd.s32 %s198, %s199
        %s201 = smul.addr %s200, 4
        %s202 = scalar_lea.vmem %s0, %s201
        %p203 = pneg %p52
        %p204 = pneg %p49
        %p205 = scmp.lt.s32.totalorder %s21, 1
        %s206 = scalar_select %p205, %s21, 1
        %p207 = scmp.lt.s32.totalorder %s22, 0
        %s208 = scalar_select %p207, %s22, 0
        %s209 = sadd.s32 %s208, %s206
        %s210 = smul.addr %s209, 4
        %s211 = scalar_lea.vmem %s1, %s210
        %p212 = pneg %p80
        %p213 = pneg %p77
        %p214 = scmp.lt.s32.totalorder %s21, 1
        %s215 = scalar_select %p214, %s21, 1
        %p216 = scmp.lt.s32.totalorder %s22, 0
        %s217 = scalar_select %p216, %s22, 0
        %s218 = sadd.s32 %s217, %s215
        %s219 = smul.addr %s218, 4
        %s220 = scalar_lea.vmem %s2, %s219
        %p221 = pneg %p108
        %p222 = pneg %p105
        %p223 = pneg %p136
        %p224 = pneg %p133
        %s225 = sand.u32 %s123, 1
        %s226 = scalar_lea.sflag [#allocation3], %s225
        %s227 = sand.u32 %s123, 1
        %s228 = smul.addr %s227, 8
        %s229 = scalar_lea.vmem [#allocation2], %s228
        %p230 = scmp.lt.s32.totalorder %s21, 1
        %s231 = scalar_select %p230, %s21, 1
        %p232 = scmp.lt.s32.totalorder %s22, 0
        %s233 = scalar_select %p232, %s22, 0
        %s234 = smul.addr %s233, 2
        %s235 = smul.addr %s231, 2
        %s236 = sadd.s32 %s234, %s235
        %s237 = smul.addr %s236, 4
        %s238 = scalar_lea.vmem %s0, %s237
        %p239 = scmp.lt.s32.totalorder %s21, 1
        %s240 = scalar_select %p239, %s21, 1
        %p241 = scmp.lt.s32.totalorder %s22, 0
        %s242 = scalar_select %p241, %s22, 0
        %s243 = sadd.s32 %s242, %s240
        %s244 = smul.addr %s243, 4
        %s245 = scalar_lea.vmem %s1, %s244
        %p246 = scmp.lt.s32.totalorder %s21, 1
        %s247 = scalar_select %p246, %s21, 1
        %p248 = scmp.lt.s32.totalorder %s22, 0
        %s249 = scalar_select %p248, %s22, 0
        %s250 = sadd.s32 %s249, %s247
        %s251 = smul.addr %s250, 4
        %s252 = scalar_lea.vmem %s2, %s251
        %v253 = vld [vmem:[%s238] sm:$0xff]
        %v255 = vcombine.high %v253, %v253
        %vm257 = vcmask 1043456
        %v258 = vsel %vm257, %v253, 0.0
        %v259 = vsel %vm257, %v255, 0.0
        %v260 = vadd.f32 %v258, %v259
        %261 = vadd.xlane.f32.xlu0 %v260
        %v262 = vpop.xlane.xlu0 %261
        %v263 = vmul.f32 %v262, 0.00390625
        %v266 = vunpack.c.l.s4 839922192
        %v267 = vunpack.c.0.s8 %v266
        %v268 = vlaneseq
        %v269 = vshrl.u32 %v268, 7
        %v270 = vsub.s32 %v267, %v269
        %v271 = vrot.slane %v263, %v270
        %v273 = vsub.f32 %v253, %v271
        %v274 = vmul.f32 %v273, %v273
        %v276 = vcombine.high %v274, %v274
        %v278 = vsel %vm257, %v274, 0.0
        %v279 = vsel %vm257, %v276, 0.0
        %v280 = vadd.f32 %v278, %v279
        %281 = vadd.xlane.f32.xlu0 %v280
        %v282 = vpop.xlane.xlu0 %281
        %v283 = vmul.f32 %v282, 0.00390625
        %v284 = vadd.f32 %v283, 1e-05
        %v285 = vrsqrt.pop %v284
        %v286 = vld [vmem:[%s245] sm:$0xf]
        %v287 = vmul.f32 %v286, %v285
        %v288 = vld [vmem:[%s252] sm:$0xf]
        %v289 = vmul.f32 %v287, %v263
        %v290 = vsub.f32 %v288, %v289
        %292 = vset.pattern.permute.xlu0 0
        %293 = vperm.xlu0 %292, %v287
        %v294 = vpop.permute.xlu0 %293
        %v296 = vmul.f32 %v294, %v253
        %v297 = vmul.f32 %v294, %v255
        %299 = vset.pattern.permute.xlu0 0
        %300 = vperm.xlu0 %299, %v290
        %v301 = vpop.permute.xlu0 %300
        %v303 = vadd.f32 %v296, %v301
        %v304 = vadd.f32 %v297, %v301
        %v307 = vcombine.low %v303, %v304
        %309 = vst [vmem:[%s229] sm:$0xff] %v307
        %s310 = sand.u32 %s123, 1
        %s311 = scalar_lea.sflag [#allocation3], %s310
        %s312 = sand.u32 %s123, 1
        %s313 = smul.addr %s312, 8
        %s314 = scalar_lea.vmem [#allocation2], %s313
        // Predicated region
        $region33: #{_adain_single_pass.1} parent=31 // pred_check
          %p315 = pneg %p133
        $region34: #{_adain_single_pass.1} parent=31 // pred_check_branch
          %317 = sbr.rel (%p315) target = $region36
        $region35: #{_adain_single_pass.1} parent=31 // pred_region
          %s319 = ssub.s32 128, 128
          %320 = vsyncadd %s311, %s319
          %s321 = smul.addr %s22, 2
          %s322 = smul.addr %s21, 2
          %s323 = sadd.s32 %s321, %s322
          %s324 = smul.addr %s323, 64
          %s325 = scalar_lea.hbm %s3, %s324
          %s327 = sshll.u32 %s314, 4
          %s328 = int_to_ptr.vmem [resolvable:$true] %s327
          %330 = dma.vmem_to_hbm [thread:$0]  %s328, 128, %s325, %s311
        $region36: #{_adain_single_pass.1} parent=31 // pred_fallthru
          _
      $region32: #{_adain_single_pass.1} parent=5 // pred_fallthru
        _
      %p331 = scmp.le.s32.totalorder 2, %s12
      // Predicated region
      $region37: #{_adain_single_pass.1} parent=5 // pred_check
        %p332 = pneg %p331
      $region38: #{_adain_single_pass.1} parent=5 // pred_check_branch
        %334 = sbr.rel (%p332) target = $region40
      $region39: #{_adain_single_pass.1} parent=5 // pred_region
        %s335 = ssub.s32 %s12, 2
        // Predicated region
        $region41: #{_adain_single_pass.1} parent=39 // pred_check
          %p336 = pneg %p139
        $region42: #{_adain_single_pass.1} parent=39 // pred_check_branch
          %338 = sbr.rel (%p336) target = $region44
        $region43: #{_adain_single_pass.1} parent=39 // pred_region
          %s339 = sand.u32 %s124, 1
          %s340 = scalar_lea.sflag [#allocation3], %s339
          %s341 = sand.u32 %s124, 1
          %s342 = smul.addr %s341, 8
          %s343 = scalar_lea.vmem [#allocation2], %s342
          %344 = dma.done %s340, 128
        $region44: #{_adain_single_pass.1} parent=39 // pred_fallthru
          _
      $region40: #{_adain_single_pass.1} parent=5 // pred_fallthru
        _
    $region6: #{_adain_single_pass.1} parent=1 // loop_footer
      %s16 = sadd.s32 1, %s12
    $region7: #{_adain_single_pass.1} parent=1 // loop_footer_branch
      %11 = sbr.rel target = $region3
    $region8: #{_adain_single_pass.1} parent=1 // loop_exit
      _
    %345 = vsyncpa [#allocation3], 1
    %s346 = scalar_lea.sflag [#allocation3], 1
    %347 = vsyncpa %s346, 1

</llo_original>
